<compile_context>
chip_gen: v7x
topology: tpu7x:2x2x1
jax: 0.10.0
libtpu: 0.0.40
codegen_flags: <defaults>
</compile_context>

<pallas_src>
import functools

import jax
import jax.numpy as jnp
from jax.experimental import pallas as pl
from jax.experimental.pallas import tpu as pltpu


def _make_kernel(active, op_dtype):
    def kernel(x_ref, w_ref, o_ref):
        # x_ref: (Cin, thw), w_ref: (Cout, Cin) [already op_dtype], o_ref: (Cout, thw)
        x = x_ref[...].astype(jnp.float32)
        if active:
            # Mish(x) = x * tanh(softplus(x)) = x * (t^2 + 2t) / (t^2 + 2t + 2),
            # t = e^x.  One EUP transcendental + one reciprocal.  The min(x, 20)
            # clamp prevents overflow and makes the ratio round to exactly 1.0
            # for x >= 20, so no extra compare/select is needed.
            t = jnp.exp(jnp.minimum(x, 20.0))
            num = t * t + 2.0 * t
            x = x * num * pl.reciprocal(num + 2.0, approx=False)
        o_ref[...] = jnp.dot(
            w_ref[...], x.astype(op_dtype), preferred_element_type=jnp.float32
        ).astype(o_ref.dtype)

    return kernel


def _device_kind():
    try:
        return jax.devices()[0].device_kind.lower()
    except Exception:
        return ""


def _vmem_limit_bytes():
    """Half of physical VMEM, capped at 64 MiB (=> 32 MiB on v7x, 64 MiB on v5e/v6e)."""
    cap = None
    try:
        cap = getattr(pltpu.get_tpu_info(), "vmem_capacity_bytes", None)
    except Exception:
        cap = None
    if not cap:
        cap = (64 << 20) if "v7" in _device_kind() else (128 << 20)
    return int(min(64 << 20, cap // 2))


def _choose_thw(hw, cin, cout, in_itemsize, out_itemsize, op_itemsize, vmem_limit, target):
    """Spatial (lane-axis) tile size: large, multiple of 128, VMEM-budgeted."""
    if hw <= target:
        return hw  # full extent is always a legal block shape
    # Bytes per spatial (lane) column simultaneously live in VMEM:
    #   2x double-buffered input block + 2x double-buffered output block
    #   (HBM-resident dtypes), plus the materialized f32 Mish temp, the
    #   downcast matmul operand and the f32 dot result before the output cast.
    per_col = (
        2 * cin * in_itemsize
        + 2 * cout * out_itemsize
        + cin * 4
        + cin * op_itemsize
        + cout * 4
    )
    budget = vmem_limit // 2  # headroom for weight, semaphores, compiler scratch
    cap = max(128, budget // per_col)
    thw = min(target, cap)
    return max(128, (thw // 128) * 128)


@functools.partial(jax.jit, static_argnames=("active", "thw"))
def basic_conv2d(x_nchw, weight_oihw, *, active=True, thw=None):
    """Pallas implementation of BasicConv2D.forward (kernel_size=1, stride=1).

    x_nchw:      (N, Cin, H, W)
    weight_oihw: (Cout, Cin, 1, 1)   -- PyTorch Conv2d weight layout
    returns:     (N, Cout, H, W)
    """
    N, Cin, H, W = x_nchw.shape
    Cout = weight_oihw.shape[0]
    assert weight_oihw.shape == (Cout, Cin, 1, 1)

    HW = H * W
    x3d = x_nchw.reshape(N, Cin, HW)  # free contiguous reshape (no transpose)

    # MXU operand dtype: bf16 inputs keep bf16 operands (native MXU rate on every
    # generation, incl. v5e's 128x128 MXU); f32 inputs keep f32 for reference parity.
    # TODO(synk): expose an opt-in bf16 matmul path for f32 inputs when the accuracy
    # budget allows (3-4x fewer MXU passes on v5e for large Cin/Cout).
    op_dtype = jnp.bfloat16 if x_nchw.dtype == jnp.bfloat16 else jnp.float32
    w2d = weight_oihw.reshape(Cout, Cin).astype(op_dtype)  # pre-cast once, resident

    vmem_limit = _vmem_limit_bytes()
    is_v7 = "v7" in _device_kind()
    if thw is None:
        itemsize = jnp.dtype(x_nchw.dtype).itemsize  # HBM-resident dtype, not compute dtype
        thw = _choose_thw(
            HW, Cin, Cout,
            in_itemsize=itemsize,
            out_itemsize=itemsize,
            op_itemsize=jnp.dtype(op_dtype).itemsize,
            vmem_limit=vmem_limit,
            target=2048 if is_v7 else 4096,
        )

    num_t = pl.cdiv(HW, thw)
    if num_t >= N:
        # Spatial-tile axis leads -> balanced megacore split on v7x (it is
        # usually the long axis). No effect on single-TC v5e/v6e.
        grid = (num_t, N)
        tile_map = lambda t, n: (n, 0, t)
    else:
        grid = (N, num_t)
        tile_map = lambda n, t: (n, 0, t)
    w_map = lambda *_: (0, 0)

    kernel = _make_kernel(active, op_dtype)

    flops = 2 * N * HW * Cin * Cout
    transcendentals = N * Cin * HW if active else 0
    bytes_accessed = (
        x3d.size * jnp.dtype(x_nchw.dtype).itemsize
        + N * Cout * HW * jnp.dtype(x_nchw.dtype).itemsize
        + w2d.size * jnp.dtype(op_dtype).itemsize
    )

    out3d = pl.pallas_call(
        kernel,
        out_shape=jax.ShapeDtypeStruct((N, Cout, HW), x_nchw.dtype),
        grid_spec=pltpu.PrefetchScalarGridSpec(
            num_scalar_prefetch=0,
            grid=grid,
            in_specs=[
                # activation: lane-dense spatial tile, channels on sublanes.
                # TODO(synk): pipeline_mode=pl.Buffered(3) if a measured v7x run
                # shows exposed DMA (costs one extra tile of VMEM per spec).
                pl.BlockSpec((None, Cin, thw), tile_map),
                # weight: constant block index -> stays resident across the grid
                pl.BlockSpec((Cout, Cin), w_map),
            ],
            out_specs=pl.BlockSpec((None, Cout, thw), tile_map),
        ),
        compiler_params=pltpu.CompilerParams(
            dimension_semantics=("parallel", "parallel"),
            vmem_limit_bytes=vmem_limit,
        ),
        cost_estimate=pl.CostEstimate(
            flops=flops,
            transcendentals=transcendentals,
            bytes_accessed=bytes_accessed,
        ),
    )(x3d, w2d)

    return out3d.reshape(N, Cout, H, W)


def _reference(x_nchw, weight_oihw, active=True):
    # Plain-JAX reference of (Mish +) 1x1 conv for verification.
    x = x_nchw.astype(jnp.float32)
    if active:
        sp = jnp.maximum(x, 0.0) + jnp.log1p(jnp.exp(-jnp.abs(x)))
        x = x * jnp.tanh(sp)
    w = weight_oihw.reshape(
        weight_oihw.shape[0], weight_oihw.shape[1]
    ).astype(jnp.float32)
    return jnp.einsum("nchw,oc->nohw", x, w)


if __name__ == "__main__":
    key = jax.random.PRNGKey(0)
    kx, kw = jax.random.split(key)

    N, Cin, H, W = 2, 4, 16, 16
    Cout = 8

    x = jax.random.normal(kx, (N, Cin, H, W), dtype=jnp.float32)
    # Deterministic weight init (roughly kaiming-uniform scale for fan_in=Cin).
    bound = 1.0 / (Cin ** 0.5)
    weight = jax.random.uniform(
        kw, (Cout, Cin, 1, 1), dtype=jnp.float32, minval=-bound, maxval=bound
    )

    out = jax.block_until_ready(basic_conv2d(x, weight, active=True))
    ref = _reference(x, weight, active=True)
    assert out.shape == (N, Cout, H, W)
    assert jnp.allclose(out, ref, atol=1e-4, rtol=1e-4), "mismatch vs reference (active)"

    out_na = jax.block_until_ready(basic_conv2d(x, weight, active=False))
    ref_na = _reference(x, weight, active=False)
    assert jnp.allclose(out_na, ref_na, atol=1e-4, rtol=1e-4), "mismatch vs reference (no act)"

    # Edge-block path: HW = 240 is not a multiple of thw = 128, exercising the
    # padded input block + masked writeback of the partial last spatial tile.
    x_e = jax.random.normal(kx, (1, Cin, 12, 20), dtype=jnp.float32)
    out_e = jax.block_until_ready(basic_conv2d(x_e, weight, active=True, thw=128))
    ref_e = _reference(x_e, weight, active=True)
    assert jnp.allclose(out_e, ref_e, atol=1e-4, rtol=1e-4), "mismatch vs reference (edge tile)"

    print("KERNEL_OK")
</pallas_src>

<mosaic_0001>
module attributes {stable_mosaic.version = 11 : i64} {
  func.func @kernel(%arg0: i32, %arg1: i32, %arg2: memref<1x4x256xf32, #tpu.memory_space<vmem>>, %arg3: memref<8x4xf32, #tpu.memory_space<vmem>>, %arg4: memref<1x8x256xf32, #tpu.memory_space<vmem>>) attributes {dimension_semantics = [#tpu.dimension_semantics<parallel>, #tpu.dimension_semantics<parallel>], iteration_bounds = array<i64: 2, 1>, scalar_prefetch = 0 : i64, scratch_operands = 0 : i64, tpu.core_type = #tpu.core_type<tc>, window_params = [{transform_indices = @transform_0, window_bounds = array<i64: 1, 4, 256>}, {pipeline_mode = #tpu.pipeline_mode<synchronous>, transform_indices = @transform_1, window_bounds = array<i64: 8, 4>}, {transform_indices = @transform_2, window_bounds = array<i64: 1, 8, 256>}]} {
    %c0 = arith.constant 0 : index
    %c0_0 = arith.constant 0 : index
    %c0_1 = arith.constant 0 : index
    %0 = vector.load %arg2[%c0, %c0_0, %c0_1] : memref<1x4x256xf32, #tpu.memory_space<vmem>>, vector<1x4x256xf32>
    %1 = vector.shape_cast %0 : vector<1x4x256xf32> to vector<4x256xf32>
    %cst = arith.constant 2.000000e+01 : f32
    %2 = vector.broadcast %cst : f32 to vector<4x256xf32>
    %3 = arith.minimumf %1, %2 : vector<4x256xf32>
    %4 = math.exp %3 : vector<4x256xf32>
    %5 = arith.mulf %4, %4 : vector<4x256xf32>
    %cst_2 = arith.constant 2.000000e+00 : f32
    %6 = vector.broadcast %cst_2 : f32 to vector<4x256xf32>
    %7 = arith.mulf %6, %4 : vector<4x256xf32>
    %8 = arith.addf %5, %7 : vector<4x256xf32>
    %9 = arith.mulf %1, %8 : vector<4x256xf32>
    %cst_3 = arith.constant 2.000000e+00 : f32
    %10 = vector.broadcast %cst_3 : f32 to vector<4x256xf32>
    %11 = arith.addf %8, %10 : vector<4x256xf32>
    %12 = tpu.reciprocal %11 : vector<4x256xf32> -> vector<4x256xf32>
    %13 = arith.mulf %9, %12 : vector<4x256xf32>
    %c0_4 = arith.constant 0 : index
    %c0_5 = arith.constant 0 : index
    %14 = vector.load %arg3[%c0_4, %c0_5] : memref<8x4xf32, #tpu.memory_space<vmem>>, vector<8x4xf32>
    %cst_6 = arith.constant dense<0.000000e+00> : vector<8x256xf32>
    %15 = tpu.matmul %14, %13, %cst_6 {dimension_numbers = #tpu.dot_dimension_numbers<[1], [0], [0], [1], [0, 0, 1, 1], [], []>} : vector<8x4xf32>, vector<4x256xf32>, vector<8x256xf32> -> vector<8x256xf32>
    %c0_7 = arith.constant 0 : index
    %c0_8 = arith.constant 0 : index
    %c0_9 = arith.constant 0 : index
    %16 = vector.load %arg4[%c0_7, %c0_8, %c0_9] : memref<1x8x256xf32, #tpu.memory_space<vmem>>, vector<1x8x256xf32>
    %17 = vector.shape_cast %16 : vector<1x8x256xf32> to vector<8x256xf32>
    %18 = vector.shape_cast %15 : vector<8x256xf32> to vector<1x8x256xf32>
    tpu.vector_store %arg4[%c0_7, %c0_8, %c0_9], %18 {strides = array<i32>} : memref<1x8x256xf32, #tpu.memory_space<vmem>>, vector<1x8x256xf32>,
    return
  }
  func.func @transform_0(%arg0: i32, %arg1: i32) -> (i32, i32, i32) {
    %c0_i32 = arith.constant 0 : i32
    %c0_i32_0 = arith.constant 0 : i32
    return %arg0, %c0_i32, %arg1 : i32, i32, i32
  }
  func.func @transform_1(%arg0: i32, %arg1: i32) -> (i32, i32) {
    %c0_i32 = arith.constant 0 : i32
    %c0_i32_0 = arith.constant 0 : i32
    %c0_i32_1 = arith.constant 0 : i32
    return %c0_i32, %c0_i32_0 : i32, i32
  }
  func.func @transform_2(%arg0: i32, %arg1: i32) -> (i32, i32, i32) {
    %c0_i32 = arith.constant 0 : i32
    %c0_i32_0 = arith.constant 0 : i32
    return %arg0, %c0_i32, %arg1 : i32, i32, i32
  }
}

</mosaic_0001>

<llo_original>
// kernel: basic_conv2d.1
$region0: #{basic_conv2d.1}
  #allocation0 [shape = 'u32[]', space=smem, size = 0x4, offset = 0x4, fixed_abs, tag = 'smem constant byte address 0x4 - core index']
  #allocation1 [shape = 'u32[144,128]{1,0:T(1,128)}', space=vmem, size = 0x12000, scoped, tag = 'internal scratch']
  %s0 = inlined_call_operand.hbm [shape: f32[2,4,256], index: 0, kind: input, shape index: {}]
  %s1 = inlined_call_operand.hbm [shape: f32[8,4], index: 1, kind: input, shape index: {}]
  %s2 = inlined_call_operand.hbm [shape: f32[2,8,256], index: 2, kind: output, shape index: {}]
  %s3 = sld [smem:[#allocation0]]
  $region49: #{basic_conv2d.1} parent=0
    _
  %s5 = ssub.s32 1, %s3
  %s6 = scalar_select 0, %s5, %s3
  $region1: #{basic_conv2d.1} parent=0
    #allocation2 [shape = 'u8[8192]{0}', space=vmem, size = 0x2000, scoped, tag = 'input window, operand 0']
    #allocation3 [shape = 's32[2]{0}', space=sflag, size = 0x8, scoped, tag = 'scoped memory for basic_conv2d.1']
    #allocation4 [shape = 's32[2]{0}', space=sflag, size = 0x8, scoped, tag = 'scoped memory for basic_conv2d.1']
    #allocation5 [shape = 'u8[4096]{0}', space=vmem, size = 0x1000, scoped, tag = 'input window, operand 1, single buffered']
    #allocation6 [shape = 's32[1]{0}', space=sflag, size = 0x4, scoped, tag = 'scoped memory for basic_conv2d.1']
    #allocation7 [shape = 'u8[16384]{0}', space=vmem, size = 0x4000, scoped, tag = 'output window, operand 0']
    %7 = vsyncpa [#allocation3], 0
    %s8 = scalar_lea.sflag [#allocation3], 1
    %9 = vsyncpa %s8, 0
    %10 = vsyncpa [#allocation6], 0
    %11 = vsyncpa [#allocation4], 0
    %s12 = scalar_lea.sflag [#allocation4], 1
    %13 = vsyncpa %s12, 0
    loop: start=0, step=1, limit=4
    $region2: #{basic_conv2d.1} parent=1 // loop_pre_header
      _
    $region3: #{basic_conv2d.1} parent=1 // loop_header
      %s15 = sphi 0, %s19
      %p16 = scmp.ge.s32.totalorder %s15, 4
      %s22 = sphi 0, %s34
      %s23 = sphi 0, %s30
      %s24 = sphi 0, %s22
      %s25 = sphi 0, %s23
      %s26 = sphi 0, %s24
      %s27 = sphi 0, %s25
      %s39 = sphi 0, %s41
      %s42 = sphi 0, %s39
      %s43 = sphi 0, %s42
      %s59 = sphi 0, %s43
      %s63 = sphi 0, %s63
      %s65 = sphi 0, %s63
      %s66 = sphi 0, %s65
      %s80 = sphi 0, %s66
      %s88 = sphi 0, %s90
      %s91 = sphi 0, %s88
      %s92 = sphi 0, %s91
      %s108 = sphi 0, %s92
    $region4: #{basic_conv2d.1} parent=1 // loop_header_branch
      %18 = sbr.rel (%p16) target = $region8
    $region5: #{basic_conv2d.1} parent=1 // loop_body
      %s20 = ssub.s32 %s15, 1
      %s21 = ssub.s32 %s15, 2
      %s28 = sadd.s32 1, %s23
      %p29 = scmp.ge.s32.totalorder %s28, 1
      %s30 = scalar_select %p29, 0, %s28
      %s31 = sadd.s32 1, %s22
      %s32 = scalar_select %p29, %s31, %s22
      %p33 = scmp.ge.s32.totalorder %s32, 2
      %s34 = scalar_select %p33, 0, %s32
      %s35 = ssub.s32 %s22, %s34
      %s36 = ssub.s32 %s23, %s30
      %s37 = sor.u32 %s35, %s36
      %p38 = scmp.eq.s32.totalorder %s37, 0
      %s40 = sadd.s32 %s39, 1
      %s41 = scalar_select %p38, %s39, %s40
      %p44 = pneg %p38
      %p45 = scmp.eq.s32.totalorder %s15, 1
      %p46 = por %p44, %p45
      %p47 = scmp.ne.s32.totalorder %s39, %s42
      %p48 = scmp.eq.s32.totalorder %s15, 0
      %p49 = por %p47, %p48
      %p50 = scmp.ne.s32.totalorder %s39, %s42
      %p51 = scmp.eq.s32.totalorder %s20, 1
      %p52 = por %p50, %p51
      %p53 = scmp.ne.s32.totalorder %s42, %s43
      %p54 = scmp.eq.s32.totalorder %s20, 0
      %p55 = por %p53, %p54
      %p56 = scmp.ne.s32.totalorder %s42, %s43
      %p57 = scmp.eq.s32.totalorder %s21, 1
      %p58 = por %p56, %p57
      %p60 = scmp.ne.s32.totalorder %s43, %s59
      %p61 = scmp.eq.s32.totalorder %s21, 0
      %p62 = por %p60, %p61
      %s64 = sadd.s32 %s63, 1
      %p67 = scmp.eq.s32.totalorder %s15, 1
      %p68 = scmp.ne.s32.totalorder %s63, %s65
      %p69 = scmp.eq.s32.totalorder %s15, 0
      %p70 = por %p68, %p69
      %p71 = scmp.ne.s32.totalorder %s63, %s65
      %p72 = scmp.eq.s32.totalorder %s20, 1
      %p73 = por %p71, %p72
      %p74 = scmp.ne.s32.totalorder %s65, %s66
      %p75 = scmp.eq.s32.totalorder %s20, 0
      %p76 = por %p74, %p75
      %p77 = scmp.ne.s32.totalorder %s65, %s66
      %p78 = scmp.eq.s32.totalorder %s21, 1
      %p79 = por %p77, %p78
      %p81 = scmp.ne.s32.totalorder %s66, %s80
      %p82 = scmp.eq.s32.totalorder %s21, 0
      %p83 = por %p81, %p82
      %s84 = ssub.s32 %s22, %s34
      %s85 = ssub.s32 %s23, %s30
      %s86 = sor.u32 %s84, %s85
      %p87 = scmp.eq.s32.totalorder %s86, 0
      %s89 = sadd.s32 %s88, 1
      %s90 = scalar_select %p87, %s88, %s89
      %p93 = pneg %p87
      %p94 = scmp.eq.s32.totalorder %s15, 1
      %p95 = por %p93, %p94
      %p96 = scmp.ne.s32.totalorder %s88, %s91
      %p97 = scmp.eq.s32.totalorder %s15, 0
      %p98 = por %p96, %p97
      %p99 = scmp.ne.s32.totalorder %s88, %s91
      %p100 = scmp.eq.s32.totalorder %s20, 1
      %p101 = por %p99, %p100
      %p102 = scmp.ne.s32.totalorder %s91, %s92
      %p103 = scmp.eq.s32.totalorder %s20, 0
      %p104 = por %p102, %p103
      %p105 = scmp.ne.s32.totalorder %s91, %s92
      %p106 = scmp.eq.s32.totalorder %s21, 1
      %p107 = por %p105, %p106
      %p109 = scmp.ne.s32.totalorder %s92, %s108
      %p110 = scmp.eq.s32.totalorder %s21, 0
      %p111 = por %p109, %p110
      %p112 = scmp.le.s32.totalorder 1, %s15
      %p113 = scmp.lt.s32.totalorder %s15, 3
      %p114 = pnand %p112, %p113
      %p115 = pneg %p114
      // Predicated region
      $region9: #{basic_conv2d.1} parent=5 // pred_check
        _
      $region10: #{basic_conv2d.1} parent=5 // pred_check_branch
        %117 = sbr.rel (%p114) target = $region12
      $region11: #{basic_conv2d.1} parent=5 // pred_region
        %s118 = ssub.s32 %s15, 1
        // Predicated region
        $region13: #{basic_conv2d.1} parent=11 // pred_check
          %p119 = pneg %p76
        $region14: #{basic_conv2d.1} parent=11 // pred_check_branch
          %121 = sbr.rel (%p119) target = $region16
        $region15: #{basic_conv2d.1} parent=11 // pred_region
          %s123 = ssub.s32 128, 128
          %124 = vsyncadd [#allocation6], %s123
          %s126 = sshll.u32 [#allocation5], 4
          %s127 = int_to_ptr.vmem [resolvable:$true] %s126
          %129 = dma.hbm_to_vmem [thread:$0]  %s1, 128, %s127, [#allocation6]
        $region16: #{basic_conv2d.1} parent=11 // pred_fallthru
          _
      $region12: #{basic_conv2d.1} parent=5 // pred_fallthru
        _
      %p130 = scmp.lt.s32.totalorder %s15, 2
      // Predicated region
      $region17: #{basic_conv2d.1} parent=5 // pred_check
        %p131 = pneg %p130
      $region18: #{basic_conv2d.1} parent=5 // pred_check_branch
        %133 = sbr.rel (%p131) target = $region20
      $region19: #{basic_conv2d.1} parent=5 // pred_region
        // Predicated region
        $region21: #{basic_conv2d.1} parent=19 // pred_check
          %p134 = pneg %p49
        $region22: #{basic_conv2d.1} parent=19 // pred_check_branch
          %136 = sbr.rel (%p134) target = $region24
        $region23: #{basic_conv2d.1} parent=19 // pred_region
          %s137 = sand.u32 %s39, 1
          %s138 = scalar_lea.sflag [#allocation3], %s137
          %s139 = sand.u32 %s39, 1
          %s140 = smul.addr %s139, 8
          %s141 = scalar_lea.vmem [#allocation2], %s140
          %s142 = smul.u32 2, %s23
          %s144 = ssub.s32 128, 128
          %145 = vsyncadd %s138, %s144
          %s146 = smul.addr %s22, 2
          %s147 = sadd.s32 %s142, %s146
          %s148 = smul.addr %s147, 64
          %s149 = scalar_lea.hbm %s0, %s148
          %s151 = sshll.u32 %s141, 4
          %s152 = int_to_ptr.vmem [resolvable:$true] %s151
          %154 = dma.hbm_to_vmem [thread:$0]  %s149, 128, %s152, %s138
        $region24: #{basic_conv2d.1} parent=19 // pred_fallthru
          _
      $region20: #{basic_conv2d.1} parent=5 // pred_fallthru
        _
      %p155 = scmp.le.s32.totalorder 1, %s15
      %p156 = scmp.lt.s32.totalorder %s15, 3
      %p157 = pnand %p155, %p156
      %p158 = pneg %p157
      // Predicated region
      $region25: #{basic_conv2d.1} parent=5 // pred_check
        _
      $region26: #{basic_conv2d.1} parent=5 // pred_check_branch
        %160 = sbr.rel (%p157) target = $region28
      $region27: #{basic_conv2d.1} parent=5 // pred_region
        %s161 = ssub.s32 %s15, 1
        %s162 = sand.u32 %s42, 1
        %s163 = scalar_lea.sflag [#allocation3], %s162
        %s164 = sand.u32 %s42, 1
        %s165 = smul.addr %s164, 8
        %s166 = scalar_lea.vmem [#allocation2], %s165
        // Predicated region
        $region29: #{basic_conv2d.1} parent=27 // pred_check
          %p167 = pneg %p55
        $region30: #{basic_conv2d.1} parent=27 // pred_check_branch
          %169 = sbr.rel (%p167) target = $region32
        $region31: #{basic_conv2d.1} parent=27 // pred_region
          %170 = dma.done %s163, 128
        $region32: #{basic_conv2d.1} parent=27 // pred_fallthru
          _
        // Predicated region
        $region33: #{basic_conv2d.1} parent=27 // pred_check
          %p171 = pneg %p76
        $region34: #{basic_conv2d.1} parent=27 // pred_check_branch
          %173 = sbr.rel (%p171) target = $region36
        $region35: #{basic_conv2d.1} parent=27 // pred_region
          %174 = dma.done [#allocation6], 128
        $region36: #{basic_conv2d.1} parent=27 // pred_fallthru
          _
        %s175 = sand.u32 %s42, 1
        %s176 = scalar_lea.sflag [#allocation3], %s175
        %s177 = sand.u32 %s42, 1
        %s178 = smul.addr %s177, 8
        %s179 = scalar_lea.vmem [#allocation2], %s178
        %p180 = pneg %p55
        %p181 = pneg %p52
        %p182 = pneg %p76
        %p183 = pneg %p73
        %p184 = pneg %p104
        %p185 = pneg %p101
        %s186 = sand.u32 %s91, 1
        %s187 = scalar_lea.sflag [#allocation4], %s186
        %s188 = sand.u32 %s91, 1
        %s189 = smul.addr %s188, 16
        %s190 = scalar_lea.vmem [#allocation7], %s189
        %s191 = smul.u32 2, %s25
        %s192 = smul.u32 2, %s25
        %v193 = vld [vmem:[%s166] sm:$0xff]
        %v194 = vmin.f32 %v193, 20.0
        %v195 = vmul.f32 %v194, 1.442695
        %v196 = vpow.pop %v195
        %v197 = vmul.f32 %v196, %v196
        %v198 = vmul.f32 %v196, 2.0
        %v199 = vadd.f32 %v197, %v198
        %v200 = vmul.f32 %v193, %v199
        %v201 = vadd.f32 %v199, 2.0
        %v202 = vrcp.pop %v201
        %v203 = vmul.f32 %v200, %v202
        %v204 = vld [vmem:[#allocation5] sm:$0xff]
        %v206 = vcombine.high %v203, %v203
        %vm207 = vcmask 31744
        %v209 = vsel %vm207, %v204, 0
        %vm211 = vcmask 1043456
        %v212 = vsel %vm211, %v203, 0
        %v214 = vsel %vm211, %v206, 0
        %216 = vmatprep.subr.mxu0 %v214
        %217 = vmatpush1.msra.mxu0 %v212
        %218 = vmatprep.subr.mxu0 0.0
        %219 = vmatpush1.msra.mxu0 0.0
        %220 = vmatprep.subr.mxu0 0.0
        %221 = vmatpush1.msra.mxu0 0.0
        %222 = vmatprep.subr.mxu0 0.0
        %223 = vmatpush1.msra.mxu0 0.0
        %224 = vmatprep.subr.mxu0 0.0
        %225 = vmatpush1.msra.mxu0 0.0
        %226 = vmatprep.subr.mxu0 0.0
        %227 = vmatpush1.msra.mxu0 0.0
        %228 = vmatprep.subr.mxu0 0.0
        %229 = vmatpush1.msra.mxu0 0.0
        %230 = vmatprep.subr.mxu0 0.0
        %231 = vmatpush1.msra.mxu0 0.0
        %232 = vmatprep.subr.mxu0 0.0
        %233 = vmatpush1.msra.mxu0 0.0
        %234 = vmatprep.subr.mxu0 0.0
        %235 = vmatpush1.msra.mxu0 0.0
        %236 = vmatprep.subr.mxu0 0.0
        %237 = vmatpush1.msra.mxu0 0.0
        %238 = vmatprep.subr.mxu0 0.0
        %239 = vmatpush1.msra.mxu0 0.0
        %240 = vmatprep.subr.mxu0 0.0
        %241 = vmatpush1.msra.mxu0 0.0
        %242 = vmatprep.subr.mxu0 0.0
        %243 = vmatpush1.msra.mxu0 0.0
        %244 = vmatprep.subr.mxu0 0.0
        %245 = vmatpush1.msra.mxu0 0.0
        %246 = vmatprep.subr.mxu0 0.0
        %247 = vmatpush1.msra.mxu0 0.0
        %248 = vmatprep.subr.mxu0 0.0
        %249 = vmatpush1.msra.mxu0 0.0
        %250 = vmatprep.subr.mxu0 0.0
        %251 = vmatpush1.msra.mxu0 0.0
        %252 = vmatprep.subr.mxu0 0.0
        %253 = vmatpush1.msra.mxu0 0.0
        %254 = vmatprep.subr.mxu0 0.0
        %255 = vmatpush1.msra.mxu0 0.0
        %256 = vmatprep.subr.mxu0 0.0
        %257 = vmatpush1.msra.mxu0 0.0
        %258 = vmatprep.subr.mxu0 0.0
        %259 = vmatpush1.msra.mxu0 0.0
        %260 = vmatprep.subr.mxu0 0.0
        %261 = vmatpush1.msra.mxu0 0.0
        %262 = vmatprep.subr.mxu0 0.0
        %263 = vmatpush1.msra.mxu0 0.0
        %264 = vmatprep.subr.mxu0 0.0
        %265 = vmatpush1.msra.mxu0 0.0
        %266 = vmatprep.subr.mxu0 0.0
        %267 = vmatpush1.msra.mxu0 0.0
        %268 = vmatprep.subr.mxu0 0.0
        %269 = vmatpush1.msra.mxu0 0.0
        %270 = vmatprep.subr.mxu0 0.0
        %271 = vmatpush1.msra.mxu0 0.0
        %272 = vmatprep.subr.mxu0 0.0
        %273 = vmatpush1.msra.mxu0 0.0
        %274 = vmatprep.subr.mxu0 0.0
        %275 = vmatpush1.msra.mxu0 0.0
        %276 = vmatprep.subr.mxu0 0.0
        %277 = vmatpush1.msra.mxu0 0.0
        %278 = vmatprep.subr.mxu0 0.0
        %279 = vmatpush1.msra.mxu0 0.0
        %280 = vmatprep.mubr.f32.mxu0 0.0
        %281 = vmatmul.mubr.f32.gmra.mrb[0].mxu0 %v209
        %v282 = vpop.f32.mrb[0].mxu0
        %v283 = vadd.f32 0.0, %v282
        %v284 = vpop.f32.mrb[0].mxu0
        %v285 = vadd.f32 0.0, %v284
        %286 = vdwg.mxu0
        %287 = vst [vmem:[%s190] sm:$0xff] %v283
        %288 = vst [vmem:[%s190 + $0x8] sm:$0xff] %v285
        %s289 = sand.u32 %s91, 1
        %s290 = scalar_lea.sflag [#allocation4], %s289
        %s291 = sand.u32 %s91, 1
        %s292 = smul.addr %s291, 16
        %s293 = scalar_lea.vmem [#allocation7], %s292
        // Predicated region
        $region37: #{basic_conv2d.1} parent=27 // pred_check
          %p294 = pneg %p101
        $region38: #{basic_conv2d.1} parent=27 // pred_check_branch
          %296 = sbr.rel (%p294) target = $region40
        $region39: #{basic_conv2d.1} parent=27 // pred_region
          %s297 = smul.u32 2, %s25
          %s299 = ssub.s32 256, 256
          %300 = vsyncadd %s290, %s299
          %s301 = smul.addr %s24, 2
          %s302 = sadd.s32 %s297, %s301
          %s303 = smul.addr %s302, 128
          %s304 = scalar_lea.hbm %s2, %s303
          %s306 = sshll.u32 %s293, 4
          %s307 = int_to_ptr.vmem [resolvable:$true] %s306
          %309 = dma.vmem_to_hbm [thread:$0]  %s307, 256, %s304, %s290
        $region40: #{basic_conv2d.1} parent=27 // pred_fallthru
          _
      $region28: #{basic_conv2d.1} parent=5 // pred_fallthru
        _
      %p310 = scmp.le.s32.totalorder 2, %s15
      // Predicated region
      $region41: #{basic_conv2d.1} parent=5 // pred_check
        %p311 = pneg %p310
      $region42: #{basic_conv2d.1} parent=5 // pred_check_branch
        %313 = sbr.rel (%p311) target = $region44
      $region43: #{basic_conv2d.1} parent=5 // pred_region
        %s314 = ssub.s32 %s15, 2
        // Predicated region
        $region45: #{basic_conv2d.1} parent=43 // pred_check
          %p315 = pneg %p107
        $region46: #{basic_conv2d.1} parent=43 // pred_check_branch
          %317 = sbr.rel (%p315) target = $region48
        $region47: #{basic_conv2d.1} parent=43 // pred_region
          %s318 = sand.u32 %s92, 1
          %s319 = scalar_lea.sflag [#allocation4], %s318
          %s320 = sand.u32 %s92, 1
          %s321 = smul.addr %s320, 16
          %s322 = scalar_lea.vmem [#allocation7], %s321
          %323 = dma.done %s319, 256
        $region48: #{basic_conv2d.1} parent=43 // pred_fallthru
          _
      $region44: #{basic_conv2d.1} parent=5 // pred_fallthru
        _
    $region6: #{basic_conv2d.1} parent=1 // loop_footer
      %s19 = sadd.s32 1, %s15
    $region7: #{basic_conv2d.1} parent=1 // loop_footer_branch
      %14 = sbr.rel target = $region3
    $region8: #{basic_conv2d.1} parent=1 // loop_exit
      _
    %324 = vsyncpa [#allocation3], 1
    %s325 = scalar_lea.sflag [#allocation3], 1
    %326 = vsyncpa %s325, 1
    %327 = vsyncpa [#allocation6], 1
    %328 = vsyncpa [#allocation4], 1
    %s329 = scalar_lea.sflag [#allocation4], 1
    %330 = vsyncpa %s329, 1

</llo_original>
